<compile_context>
chip_gen: v6e
topology: v6e:2x2x1
jax: 0.10.0
libtpu: 0.0.40
codegen_flags: <defaults>
</compile_context>

<pallas_src>
import jax
import jax.numpy as jnp
from jax import lax
from jax.experimental import pallas as pl
from jax.experimental.pallas import tpu as pltpu


def gru_fc_kernel(x_ref, w_ih_ref, w_hh_ref, b_gx_ref, b_hn_ref,
                  w_fc_ref, b_fc_ref, out_ref):
    """Hoisted input projection + fused-gate GRU recurrence + final Linear.

    x_ref    : (T*B, I)  time-major flattened input (rows t*B .. t*B+B-1 = step t)
    w_ih_ref : (I, 3H)   fused input->gate weights, gate order (r | z | n)
    w_hh_ref : (H, 3H)   fused hidden->gate weights, gate order (r | z | n)
    b_gx_ref : (1, 3H)   pre-folded biases: [b_ir+b_hr | b_iz+b_hz | b_in]
    b_hn_ref : (1, H)    hidden-side bias of the n gate (added before r*)
    w_fc_ref : (H, O)    fc weight (pre-transposed)
    b_fc_ref : (1, O)
    out_ref  : (B, O)
    """
    TB, _ = x_ref.shape
    H = w_hh_ref.shape[0]
    B = out_ref.shape[0]
    T = TB // B

    def dot(a, b):
        return jnp.dot(a, b, preferred_element_type=jnp.float32)

    # --- hoisted input projection: one matmul for all time steps -------------
    gx = dot(x_ref[...], w_ih_ref[...]) + b_gx_ref[...]          # (T*B, 3H)

    w_hh = w_hh_ref[...]                                          # (H, 3H)
    b_hn = jnp.broadcast_to(b_hn_ref[...], (B, H))                # hoisted broadcast

    # --- recurrence: one fused (B,H)x(H,3H) matmul per step, fully unrolled --
    h = jnp.zeros((B, H), jnp.float32)
    for t in range(T):                                            # static unroll
        gx_t = gx[t * B:(t + 1) * B]                              # (B, 3H) static slice
        hh = dot(h, w_hh)                                         # (B, 3H)
        r = jax.nn.sigmoid(gx_t[:, 0:H] + hh[:, 0:H])
        z = jax.nn.sigmoid(gx_t[:, H:2 * H] + hh[:, H:2 * H])
        n = jnp.tanh(gx_t[:, 2 * H:3 * H] + r * (hh[:, 2 * H:3 * H] + b_hn))
        h = (1.0 - z) * n + z * h

    # --- final Linear ---------------------------------------------------------
    out_ref[...] = dot(h, w_fc_ref[...]) + b_fc_ref[...]          # (B, O)


def gru_model_forward(x, params):
    """Wrapper: fuses gate weights/biases, reorders x time-major, calls Pallas."""
    B, T, I = x.shape
    H = params["w_hh"].shape[-1]
    O = params["w_fc"].shape[1]

    # Fused gate layouts (gate order r | z | n along the last axis).
    w_ih_all = jnp.concatenate(
        [params["w_ih"][0], params["w_ih"][1], params["w_ih"][2]], axis=1)  # (I, 3H)
    w_hh_all = jnp.concatenate(
        [params["w_hh"][0], params["w_hh"][1], params["w_hh"][2]], axis=1)  # (H, 3H)
    b_gx = jnp.concatenate(
        [params["b_ih"][0] + params["b_hh"][0],     # r: b_ir + b_hr
         params["b_ih"][1] + params["b_hh"][1],     # z: b_iz + b_hz
         params["b_ih"][2]],                        # n: b_in only (b_hn stays inside)
        axis=1)                                                              # (1, 3H)
    b_hn = params["b_hh"][2]                                                 # (1, H)

    # Time-major, pre-flattened input so the kernel does no reshapes.
    x_tm = jnp.transpose(x, (1, 0, 2)).reshape(T * B, I)

    vmem = pl.BlockSpec(memory_space=pltpu.MemorySpace.VMEM)
    return pl.pallas_call(
        gru_fc_kernel,
        out_shape=jax.ShapeDtypeStruct((B, O), jnp.float32),
        in_specs=[vmem] * 7,
        out_specs=vmem,
    )(x_tm, w_ih_all, w_hh_all, b_gx, b_hn, params["w_fc"], params["b_fc"])


def init_params(key, input_size, hidden_size, output_size):
    """Deterministic init mirroring PyTorch's U(-1/sqrt(H), 1/sqrt(H)) layout.

    PyTorch stores weight_ih_l0 as (3H, I) with gate order (r, z, n); we keep
    that order but pre-transpose each gate block to (I, H) / (H, H) so the
    kernel does x @ W^T directly.
    """
    ks = jax.random.split(key, 8)
    H, I, O = hidden_size, input_size, output_size
    s = 1.0 / jnp.sqrt(jnp.float32(H))

    w_ih = jax.random.uniform(ks[0], (3, H, I), jnp.float32, -s, s)
    w_hh = jax.random.uniform(ks[1], (3, H, H), jnp.float32, -s, s)
    b_ih = jax.random.uniform(ks[2], (3, 1, H), jnp.float32, -s, s)
    b_hh = jax.random.uniform(ks[3], (3, 1, H), jnp.float32, -s, s)

    s_fc = 1.0 / jnp.sqrt(jnp.float32(H))
    w_fc = jax.random.uniform(ks[4], (O, H), jnp.float32, -s_fc, s_fc)
    b_fc = jax.random.uniform(ks[5], (1, O), jnp.float32, -s_fc, s_fc)

    return {
        "w_ih": jnp.transpose(w_ih, (0, 2, 1)),   # (3, I, H)
        "w_hh": jnp.transpose(w_hh, (0, 2, 1)),   # (3, H, H)
        "b_ih": b_ih,                             # (3, 1, H)
        "b_hh": b_hh,                             # (3, 1, H)
        "w_fc": jnp.transpose(w_fc, (1, 0)),      # (H, O)
        "b_fc": b_fc,                             # (1, O)
    }


def gru_model_reference(x, params):
    """Pure-JAX reference (unfused GRU equations, same math as PyTorch)."""
    B, T, _ = x.shape
    H = params["w_hh"].shape[-1]
    w_ir, w_iz, w_in = params["w_ih"]
    w_hr, w_hz, w_hn = params["w_hh"]
    b_ir, b_iz, b_in = params["b_ih"]
    b_hr, b_hz, b_hn = params["b_hh"]

    def step(h, x_t):
        r = jax.nn.sigmoid(x_t @ w_ir + b_ir + h @ w_hr + b_hr)
        z = jax.nn.sigmoid(x_t @ w_iz + b_iz + h @ w_hz + b_hz)
        n = jnp.tanh(x_t @ w_in + b_in + r * (h @ w_hn + b_hn))
        h_new = (1.0 - z) * n + z * h
        return h_new, None

    h0 = jnp.zeros((B, H), jnp.float32)
    h_last, _ = lax.scan(step, h0, jnp.transpose(x, (1, 0, 2)))
    return h_last @ params["w_fc"] + params["b_fc"]


if __name__ == "__main__":
    batch, seq, input_size, hidden_size, output_size = 2, 8, 4, 32, 8

    key = jax.random.PRNGKey(0)
    k_x, k_p = jax.random.split(key)
    x = jax.random.normal(k_x, (batch, seq, input_size), jnp.float32)
    params = init_params(k_p, input_size, hidden_size, output_size)

    out = gru_model_forward(x, params)
    out = jax.block_until_ready(out)

    ref = gru_model_reference(x, params)
    assert out.shape == (batch, output_size)
    assert jnp.allclose(out, ref, atol=1e-5, rtol=1e-5), "mismatch vs reference"

    print("KERNEL_OK")
</pallas_src>

<mosaic_0001>
module attributes {stable_mosaic.version = 11 : i64} {
  func.func @gru_fc_kernel(%arg0: memref<16x4xf32, #tpu.memory_space<vmem>>, %arg1: memref<4x96xf32, #tpu.memory_space<vmem>>, %arg2: memref<32x96xf32, #tpu.memory_space<vmem>>, %arg3: memref<1x96xf32, #tpu.memory_space<vmem>>, %arg4: memref<1x32xf32, #tpu.memory_space<vmem>>, %arg5: memref<32x8xf32, #tpu.memory_space<vmem>>, %arg6: memref<1x8xf32, #tpu.memory_space<vmem>>, %arg7: memref<2x8xf32, #tpu.memory_space<vmem>>) attributes {dimension_semantics = [], scalar_prefetch = 0 : i64, scratch_operands = 0 : i64, tpu.core_type = #tpu.core_type<tc>} {
    %c0 = arith.constant 0 : index
    %c0_0 = arith.constant 0 : index
    %0 = vector.load %arg0[%c0, %c0_0] : memref<16x4xf32, #tpu.memory_space<vmem>>, vector<16x4xf32>
    %c0_1 = arith.constant 0 : index
    %c0_2 = arith.constant 0 : index
    %1 = vector.load %arg1[%c0_1, %c0_2] : memref<4x96xf32, #tpu.memory_space<vmem>>, vector<4x96xf32>
    %cst = arith.constant dense<0.000000e+00> : vector<16x96xf32>
    %2 = tpu.matmul %0, %1, %cst {dimension_numbers = #tpu.dot_dimension_numbers<[1], [0], [0], [1], [0, 0, 1, 1], [], []>} : vector<16x4xf32>, vector<4x96xf32>, vector<16x96xf32> -> vector<16x96xf32>
    %c0_3 = arith.constant 0 : index
    %c0_4 = arith.constant 0 : index
    %3 = vector.load %arg3[%c0_3, %c0_4] : memref<1x96xf32, #tpu.memory_space<vmem>>, vector<1x96xf32>
    %4 = vector.broadcast %3 : vector<1x96xf32> to vector<16x96xf32>
    %5 = arith.addf %2, %4 : vector<16x96xf32>
    %c0_5 = arith.constant 0 : index
    %c0_6 = arith.constant 0 : index
    %6 = vector.load %arg2[%c0_5, %c0_6] : memref<32x96xf32, #tpu.memory_space<vmem>>, vector<32x96xf32>
    %c0_7 = arith.constant 0 : index
    %c0_8 = arith.constant 0 : index
    %7 = vector.load %arg4[%c0_7, %c0_8] : memref<1x32xf32, #tpu.memory_space<vmem>>, vector<1x32xf32>
    %8 = vector.shape_cast %7 : vector<1x32xf32> to vector<1x32xf32>
    %9 = vector.broadcast %8 : vector<1x32xf32> to vector<2x32xf32>
    %cst_9 = arith.constant 0.000000e+00 : f32
    %10 = vector.broadcast %cst_9 : f32 to vector<2x32xf32>
    %11 = vector.extract_strided_slice %5 {offsets = [0, 0], sizes = [2, 96], strides = [1, 1]} : vector<16x96xf32> to vector<2x96xf32>
    %cst_10 = arith.constant dense<0.000000e+00> : vector<2x96xf32>
    %12 = tpu.matmul %10, %6, %cst_10 {dimension_numbers = #tpu.dot_dimension_numbers<[1], [0], [0], [1], [0, 0, 1, 1], [], []>} : vector<2x32xf32>, vector<32x96xf32>, vector<2x96xf32> -> vector<2x96xf32>
    %13 = vector.extract_strided_slice %11 {offsets = [0, 0], sizes = [2, 32], strides = [1, 1]} : vector<2x96xf32> to vector<2x32xf32>
    %14 = vector.extract_strided_slice %12 {offsets = [0, 0], sizes = [2, 32], strides = [1, 1]} : vector<2x96xf32> to vector<2x32xf32>
    %15 = arith.addf %13, %14 : vector<2x32xf32>
    %16 = arith.negf %15 : vector<2x32xf32>
    %17 = math.exp %16 : vector<2x32xf32>
    %cst_11 = arith.constant 1.000000e+00 : f32
    %18 = vector.broadcast %cst_11 : f32 to vector<2x32xf32>
    %19 = arith.addf %18, %17 : vector<2x32xf32>
    %20 = arith.divf %18, %19 : vector<2x32xf32>
    %21 = vector.extract_strided_slice %11 {offsets = [0, 32], sizes = [2, 32], strides = [1, 1]} : vector<2x96xf32> to vector<2x32xf32>
    %22 = vector.extract_strided_slice %12 {offsets = [0, 32], sizes = [2, 32], strides = [1, 1]} : vector<2x96xf32> to vector<2x32xf32>
    %23 = arith.addf %21, %22 : vector<2x32xf32>
    %24 = arith.negf %23 : vector<2x32xf32>
    %25 = math.exp %24 : vector<2x32xf32>
    %cst_12 = arith.constant 1.000000e+00 : f32
    %26 = vector.broadcast %cst_12 : f32 to vector<2x32xf32>
    %27 = arith.addf %26, %25 : vector<2x32xf32>
    %28 = arith.divf %26, %27 : vector<2x32xf32>
    %29 = vector.extract_strided_slice %11 {offsets = [0, 64], sizes = [2, 32], strides = [1, 1]} : vector<2x96xf32> to vector<2x32xf32>
    %30 = vector.extract_strided_slice %12 {offsets = [0, 64], sizes = [2, 32], strides = [1, 1]} : vector<2x96xf32> to vector<2x32xf32>
    %31 = arith.addf %30, %9 : vector<2x32xf32>
    %32 = arith.mulf %20, %31 : vector<2x32xf32>
    %33 = arith.addf %29, %32 : vector<2x32xf32>
    %34 = math.tanh %33 : vector<2x32xf32>
    %cst_13 = arith.constant 1.000000e+00 : f32
    %35 = vector.broadcast %cst_13 : f32 to vector<2x32xf32>
    %36 = arith.subf %35, %28 : vector<2x32xf32>
    %37 = arith.mulf %36, %34 : vector<2x32xf32>
    %38 = arith.mulf %28, %10 : vector<2x32xf32>
    %39 = arith.addf %37, %38 : vector<2x32xf32>
    %40 = vector.extract_strided_slice %5 {offsets = [2, 0], sizes = [2, 96], strides = [1, 1]} : vector<16x96xf32> to vector<2x96xf32>
    %cst_14 = arith.constant dense<0.000000e+00> : vector<2x96xf32>
    %41 = tpu.matmul %39, %6, %cst_14 {dimension_numbers = #tpu.dot_dimension_numbers<[1], [0], [0], [1], [0, 0, 1, 1], [], []>} : vector<2x32xf32>, vector<32x96xf32>, vector<2x96xf32> -> vector<2x96xf32>
    %42 = vector.extract_strided_slice %40 {offsets = [0, 0], sizes = [2, 32], strides = [1, 1]} : vector<2x96xf32> to vector<2x32xf32>
    %43 = vector.extract_strided_slice %41 {offsets = [0, 0], sizes = [2, 32], strides = [1, 1]} : vector<2x96xf32> to vector<2x32xf32>
    %44 = arith.addf %42, %43 : vector<2x32xf32>
    %45 = arith.negf %44 : vector<2x32xf32>
    %46 = math.exp %45 : vector<2x32xf32>
    %cst_15 = arith.constant 1.000000e+00 : f32
    %47 = vector.broadcast %cst_15 : f32 to vector<2x32xf32>
    %48 = arith.addf %47, %46 : vector<2x32xf32>
    %49 = arith.divf %47, %48 : vector<2x32xf32>
    %50 = vector.extract_strided_slice %40 {offsets = [0, 32], sizes = [2, 32], strides = [1, 1]} : vector<2x96xf32> to vector<2x32xf32>
    %51 = vector.extract_strided_slice %41 {offsets = [0, 32], sizes = [2, 32], strides = [1, 1]} : vector<2x96xf32> to vector<2x32xf32>
    %52 = arith.addf %50, %51 : vector<2x32xf32>
    %53 = arith.negf %52 : vector<2x32xf32>
    %54 = math.exp %53 : vector<2x32xf32>
    %cst_16 = arith.constant 1.000000e+00 : f32
    %55 = vector.broadcast %cst_16 : f32 to vector<2x32xf32>
    %56 = arith.addf %55, %54 : vector<2x32xf32>
    %57 = arith.divf %55, %56 : vector<2x32xf32>
    %58 = vector.extract_strided_slice %40 {offsets = [0, 64], sizes = [2, 32], strides = [1, 1]} : vector<2x96xf32> to vector<2x32xf32>
    %59 = vector.extract_strided_slice %41 {offsets = [0, 64], sizes = [2, 32], strides = [1, 1]} : vector<2x96xf32> to vector<2x32xf32>
    %60 = arith.addf %59, %9 : vector<2x32xf32>
    %61 = arith.mulf %49, %60 : vector<2x32xf32>
    %62 = arith.addf %58, %61 : vector<2x32xf32>
    %63 = math.tanh %62 : vector<2x32xf32>
    %cst_17 = arith.constant 1.000000e+00 : f32
    %64 = vector.broadcast %cst_17 : f32 to vector<2x32xf32>
    %65 = arith.subf %64, %57 : vector<2x32xf32>
    %66 = arith.mulf %65, %63 : vector<2x32xf32>
    %67 = arith.mulf %57, %39 : vector<2x32xf32>
    %68 = arith.addf %66, %67 : vector<2x32xf32>
    %69 = vector.extract_strided_slice %5 {offsets = [4, 0], sizes = [2, 96], strides = [1, 1]} : vector<16x96xf32> to vector<2x96xf32>
    %cst_18 = arith.constant dense<0.000000e+00> : vector<2x96xf32>
    %70 = tpu.matmul %68, %6, %cst_18 {dimension_numbers = #tpu.dot_dimension_numbers<[1], [0], [0], [1], [0, 0, 1, 1], [], []>} : vector<2x32xf32>, vector<32x96xf32>, vector<2x96xf32> -> vector<2x96xf32>
    %71 = vector.extract_strided_slice %69 {offsets = [0, 0], sizes = [2, 32], strides = [1, 1]} : vector<2x96xf32> to vector<2x32xf32>
    %72 = vector.extract_strided_slice %70 {offsets = [0, 0], sizes = [2, 32], strides = [1, 1]} : vector<2x96xf32> to vector<2x32xf32>
    %73 = arith.addf %71, %72 : vector<2x32xf32>
    %74 = arith.negf %73 : vector<2x32xf32>
    %75 = math.exp %74 : vector<2x32xf32>
    %cst_19 = arith.constant 1.000000e+00 : f32
    %76 = vector.broadcast %cst_19 : f32 to vector<2x32xf32>
    %77 = arith.addf %76, %75 : vector<2x32xf32>
    %78 = arith.divf %76, %77 : vector<2x32xf32>
    %79 = vector.extract_strided_slice %69 {offsets = [0, 32], sizes = [2, 32], strides = [1, 1]} : vector<2x96xf32> to vector<2x32xf32>
    %80 = vector.extract_strided_slice %70 {offsets = [0, 32], sizes = [2, 32], strides = [1, 1]} : vector<2x96xf32> to vector<2x32xf32>
    %81 = arith.addf %79, %80 : vector<2x32xf32>
    %82 = arith.negf %81 : vector<2x32xf32>
    %83 = math.exp %82 : vector<2x32xf32>
    %cst_20 = arith.constant 1.000000e+00 : f32
    %84 = vector.broadcast %cst_20 : f32 to vector<2x32xf32>
    %85 = arith.addf %84, %83 : vector<2x32xf32>
    %86 = arith.divf %84, %85 : vector<2x32xf32>
    %87 = vector.extract_strided_slice %69 {offsets = [0, 64], sizes = [2, 32], strides = [1, 1]} : vector<2x96xf32> to vector<2x32xf32>
    %88 = vector.extract_strided_slice %70 {offsets = [0, 64], sizes = [2, 32], strides = [1, 1]} : vector<2x96xf32> to vector<2x32xf32>
    %89 = arith.addf %88, %9 : vector<2x32xf32>
    %90 = arith.mulf %78, %89 : vector<2x32xf32>
    %91 = arith.addf %87, %90 : vector<2x32xf32>
    %92 = math.tanh %91 : vector<2x32xf32>
    %cst_21 = arith.constant 1.000000e+00 : f32
    %93 = vector.broadcast %cst_21 : f32 to vector<2x32xf32>
    %94 = arith.subf %93, %86 : vector<2x32xf32>
    %95 = arith.mulf %94, %92 : vector<2x32xf32>
    %96 = arith.mulf %86, %68 : vector<2x32xf32>
    %97 = arith.addf %95, %96 : vector<2x32xf32>
    %98 = vector.extract_strided_slice %5 {offsets = [6, 0], sizes = [2, 96], strides = [1, 1]} : vector<16x96xf32> to vector<2x96xf32>
    %cst_22 = arith.constant dense<0.000000e+00> : vector<2x96xf32>
    %99 = tpu.matmul %97, %6, %cst_22 {dimension_numbers = #tpu.dot_dimension_numbers<[1], [0], [0], [1], [0, 0, 1, 1], [], []>} : vector<2x32xf32>, vector<32x96xf32>, vector<2x96xf32> -> vector<2x96xf32>
    %100 = vector.extract_strided_slice %98 {offsets = [0, 0], sizes = [2, 32], strides = [1, 1]} : vector<2x96xf32> to vector<2x32xf32>
    %101 = vector.extract_strided_slice %99 {offsets = [0, 0], sizes = [2, 32], strides = [1, 1]} : vector<2x96xf32> to vector<2x32xf32>
    %102 = arith.addf %100, %101 : vector<2x32xf32>
    %103 = arith.negf %102 : vector<2x32xf32>
    %104 = math.exp %103 : vector<2x32xf32>
    %cst_23 = arith.constant 1.000000e+00 : f32
    %105 = vector.broadcast %cst_23 : f32 to vector<2x32xf32>
    %106 = arith.addf %105, %104 : vector<2x32xf32>
    %107 = arith.divf %105, %106 : vector<2x32xf32>
    %108 = vector.extract_strided_slice %98 {offsets = [0, 32], sizes = [2, 32], strides = [1, 1]} : vector<2x96xf32> to vector<2x32xf32>
    %109 = vector.extract_strided_slice %99 {offsets = [0, 32], sizes = [2, 32], strides = [1, 1]} : vector<2x96xf32> to vector<2x32xf32>
    %110 = arith.addf %108, %109 : vector<2x32xf32>
    %111 = arith.negf %110 : vector<2x32xf32>
    %112 = math.exp %111 : vector<2x32xf32>
    %cst_24 = arith.constant 1.000000e+00 : f32
    %113 = vector.broadcast %cst_24 : f32 to vector<2x32xf32>
    %114 = arith.addf %113, %112 : vector<2x32xf32>
    %115 = arith.divf %113, %114 : vector<2x32xf32>
    %116 = vector.extract_strided_slice %98 {offsets = [0, 64], sizes = [2, 32], strides = [1, 1]} : vector<2x96xf32> to vector<2x32xf32>
    %117 = vector.extract_strided_slice %99 {offsets = [0, 64], sizes = [2, 32], strides = [1, 1]} : vector<2x96xf32> to vector<2x32xf32>
    %118 = arith.addf %117, %9 : vector<2x32xf32>
    %119 = arith.mulf %107, %118 : vector<2x32xf32>
    %120 = arith.addf %116, %119 : vector<2x32xf32>
    %121 = math.tanh %120 : vector<2x32xf32>
    %cst_25 = arith.constant 1.000000e+00 : f32
    %122 = vector.broadcast %cst_25 : f32 to vector<2x32xf32>
    %123 = arith.subf %122, %115 : vector<2x32xf32>
    %124 = arith.mulf %123, %121 : vector<2x32xf32>
    %125 = arith.mulf %115, %97 : vector<2x32xf32>
    %126 = arith.addf %124, %125 : vector<2x32xf32>
    %127 = vector.extract_strided_slice %5 {offsets = [8, 0], sizes = [2, 96], strides = [1, 1]} : vector<16x96xf32> to vector<2x96xf32>
    %cst_26 = arith.constant dense<0.000000e+00> : vector<2x96xf32>
    %128 = tpu.matmul %126, %6, %cst_26 {dimension_numbers = #tpu.dot_dimension_numbers<[1], [0], [0], [1], [0, 0, 1, 1], [], []>} : vector<2x32xf32>, vector<32x96xf32>, vector<2x96xf32> -> vector<2x96xf32>
    %129 = vector.extract_strided_slice %127 {offsets = [0, 0], sizes = [2, 32], strides = [1, 1]} : vector<2x96xf32> to vector<2x32xf32>
    %130 = vector.extract_strided_slice %128 {offsets = [0, 0], sizes = [2, 32], strides = [1, 1]} : vector<2x96xf32> to vector<2x32xf32>
    %131 = arith.addf %129, %130 : vector<2x32xf32>
    %132 = arith.negf %131 : vector<2x32xf32>
    %133 = math.exp %132 : vector<2x32xf32>
    %cst_27 = arith.constant 1.000000e+00 : f32
    %134 = vector.broadcast %cst_27 : f32 to vector<2x32xf32>
    %135 = arith.addf %134, %133 : vector<2x32xf32>
    %136 = arith.divf %134, %135 : vector<2x32xf32>
    %137 = vector.extract_strided_slice %127 {offsets = [0, 32], sizes = [2, 32], strides = [1, 1]} : vector<2x96xf32> to vector<2x32xf32>
    %138 = vector.extract_strided_slice %128 {offsets = [0, 32], sizes = [2, 32], strides = [1, 1]} : vector<2x96xf32> to vector<2x32xf32>
    %139 = arith.addf %137, %138 : vector<2x32xf32>
    %140 = arith.negf %139 : vector<2x32xf32>
    %141 = math.exp %140 : vector<2x32xf32>
    %cst_28 = arith.constant 1.000000e+00 : f32
    %142 = vector.broadcast %cst_28 : f32 to vector<2x32xf32>
    %143 = arith.addf %142, %141 : vector<2x32xf32>
    %144 = arith.divf %142, %143 : vector<2x32xf32>
    %145 = vector.extract_strided_slice %127 {offsets = [0, 64], sizes = [2, 32], strides = [1, 1]} : vector<2x96xf32> to vector<2x32xf32>
    %146 = vector.extract_strided_slice %128 {offsets = [0, 64], sizes = [2, 32], strides = [1, 1]} : vector<2x96xf32> to vector<2x32xf32>
    %147 = arith.addf %146, %9 : vector<2x32xf32>
    %148 = arith.mulf %136, %147 : vector<2x32xf32>
    %149 = arith.addf %145, %148 : vector<2x32xf32>
    %150 = math.tanh %149 : vector<2x32xf32>
    %cst_29 = arith.constant 1.000000e+00 : f32
    %151 = vector.broadcast %cst_29 : f32 to vector<2x32xf32>
    %152 = arith.subf %151, %144 : vector<2x32xf32>
    %153 = arith.mulf %152, %150 : vector<2x32xf32>
    %154 = arith.mulf %144, %126 : vector<2x32xf32>
    %155 = arith.addf %153, %154 : vector<2x32xf32>
    %156 = vector.extract_strided_slice %5 {offsets = [10, 0], sizes = [2, 96], strides = [1, 1]} : vector<16x96xf32> to vector<2x96xf32>
    %cst_30 = arith.constant dense<0.000000e+00> : vector<2x96xf32>
    %157 = tpu.matmul %155, %6, %cst_30 {dimension_numbers = #tpu.dot_dimension_numbers<[1], [0], [0], [1], [0, 0, 1, 1], [], []>} : vector<2x32xf32>, vector<32x96xf32>, vector<2x96xf32> -> vector<2x96xf32>
    %158 = vector.extract_strided_slice %156 {offsets = [0, 0], sizes = [2, 32], strides = [1, 1]} : vector<2x96xf32> to vector<2x32xf32>
    %159 = vector.extract_strided_slice %157 {offsets = [0, 0], sizes = [2, 32], strides = [1, 1]} : vector<2x96xf32> to vector<2x32xf32>
    %160 = arith.addf %158, %159 : vector<2x32xf32>
    %161 = arith.negf %160 : vector<2x32xf32>
    %162 = math.exp %161 : vector<2x32xf32>
    %cst_31 = arith.constant 1.000000e+00 : f32
    %163 = vector.broadcast %cst_31 : f32 to vector<2x32xf32>
    %164 = arith.addf %163, %162 : vector<2x32xf32>
    %165 = arith.divf %163, %164 : vector<2x32xf32>
    %166 = vector.extract_strided_slice %156 {offsets = [0, 32], sizes = [2, 32], strides = [1, 1]} : vector<2x96xf32> to vector<2x32xf32>
    %167 = vector.extract_strided_slice %157 {offsets = [0, 32], sizes = [2, 32], strides = [1, 1]} : vector<2x96xf32> to vector<2x32xf32>
    %168 = arith.addf %166, %167 : vector<2x32xf32>
    %169 = arith.negf %168 : vector<2x32xf32>
    %170 = math.exp %169 : vector<2x32xf32>
    %cst_32 = arith.constant 1.000000e+00 : f32
    %171 = vector.broadcast %cst_32 : f32 to vector<2x32xf32>
    %172 = arith.addf %171, %170 : vector<2x32xf32>
    %173 = arith.divf %171, %172 : vector<2x32xf32>
    %174 = vector.extract_strided_slice %156 {offsets = [0, 64], sizes = [2, 32], strides = [1, 1]} : vector<2x96xf32> to vector<2x32xf32>
    %175 = vector.extract_strided_slice %157 {offsets = [0, 64], sizes = [2, 32], strides = [1, 1]} : vector<2x96xf32> to vector<2x32xf32>
    %176 = arith.addf %175, %9 : vector<2x32xf32>
    %177 = arith.mulf %165, %176 : vector<2x32xf32>
    %178 = arith.addf %174, %177 : vector<2x32xf32>
    %179 = math.tanh %178 : vector<2x32xf32>
    %cst_33 = arith.constant 1.000000e+00 : f32
    %180 = vector.broadcast %cst_33 : f32 to vector<2x32xf32>
    %181 = arith.subf %180, %173 : vector<2x32xf32>
    %182 = arith.mulf %181, %179 : vector<2x32xf32>
    %183 = arith.mulf %173, %155 : vector<2x32xf32>
    %184 = arith.addf %182, %183 : vector<2x32xf32>
    %185 = vector.extract_strided_slice %5 {offsets = [12, 0], sizes = [2, 96], strides = [1, 1]} : vector<16x96xf32> to vector<2x96xf32>
    %cst_34 = arith.constant dense<0.000000e+00> : vector<2x96xf32>
    %186 = tpu.matmul %184, %6, %cst_34 {dimension_numbers = #tpu.dot_dimension_numbers<[1], [0], [0], [1], [0, 0, 1, 1], [], []>} : vector<2x32xf32>, vector<32x96xf32>, vector<2x96xf32> -> vector<2x96xf32>
    %187 = vector.extract_strided_slice %185 {offsets = [0, 0], sizes = [2, 32], strides = [1, 1]} : vector<2x96xf32> to vector<2x32xf32>
    %188 = vector.extract_strided_slice %186 {offsets = [0, 0], sizes = [2, 32], strides = [1, 1]} : vector<2x96xf32> to vector<2x32xf32>
    %189 = arith.addf %187, %188 : vector<2x32xf32>
    %190 = arith.negf %189 : vector<2x32xf32>
    %191 = math.exp %190 : vector<2x32xf32>
    %cst_35 = arith.constant 1.000000e+00 : f32
    %192 = vector.broadcast %cst_35 : f32 to vector<2x32xf32>
    %193 = arith.addf %192, %191 : vector<2x32xf32>
    %194 = arith.divf %192, %193 : vector<2x32xf32>
    %195 = vector.extract_strided_slice %185 {offsets = [0, 32], sizes = [2, 32], strides = [1, 1]} : vector<2x96xf32> to vector<2x32xf32>
    %196 = vector.extract_strided_slice %186 {offsets = [0, 32], sizes = [2, 32], strides = [1, 1]} : vector<2x96xf32> to vector<2x32xf32>
    %197 = arith.addf %195, %196 : vector<2x32xf32>
    %198 = arith.negf %197 : vector<2x32xf32>
    %199 = math.exp %198 : vector<2x32xf32>
    %cst_36 = arith.constant 1.000000e+00 : f32
    %200 = vector.broadcast %cst_36 : f32 to vector<2x32xf32>
    %201 = arith.addf %200, %199 : vector<2x32xf32>
    %202 = arith.divf %200, %201 : vector<2x32xf32>
    %203 = vector.extract_strided_slice %185 {offsets = [0, 64], sizes = [2, 32], strides = [1, 1]} : vector<2x96xf32> to vector<2x32xf32>
    %204 = vector.extract_strided_slice %186 {offsets = [0, 64], sizes = [2, 32], strides = [1, 1]} : vector<2x96xf32> to vector<2x32xf32>
    %205 = arith.addf %204, %9 : vector<2x32xf32>
    %206 = arith.mulf %194, %205 : vector<2x32xf32>
    %207 = arith.addf %203, %206 : vector<2x32xf32>
    %208 = math.tanh %207 : vector<2x32xf32>
    %cst_37 = arith.constant 1.000000e+00 : f32
    %209 = vector.broadcast %cst_37 : f32 to vector<2x32xf32>
    %210 = arith.subf %209, %202 : vector<2x32xf32>
    %211 = arith.mulf %210, %208 : vector<2x32xf32>
    %212 = arith.mulf %202, %184 : vector<2x32xf32>
    %213 = arith.addf %211, %212 : vector<2x32xf32>
    %214 = vector.extract_strided_slice %5 {offsets = [14, 0], sizes = [2, 96], strides = [1, 1]} : vector<16x96xf32> to vector<2x96xf32>
    %cst_38 = arith.constant dense<0.000000e+00> : vector<2x96xf32>
    %215 = tpu.matmul %213, %6, %cst_38 {dimension_numbers = #tpu.dot_dimension_numbers<[1], [0], [0], [1], [0, 0, 1, 1], [], []>} : vector<2x32xf32>, vector<32x96xf32>, vector<2x96xf32> -> vector<2x96xf32>
    %216 = vector.extract_strided_slice %214 {offsets = [0, 0], sizes = [2, 32], strides = [1, 1]} : vector<2x96xf32> to vector<2x32xf32>
    %217 = vector.extract_strided_slice %215 {offsets = [0, 0], sizes = [2, 32], strides = [1, 1]} : vector<2x96xf32> to vector<2x32xf32>
    %218 = arith.addf %216, %217 : vector<2x32xf32>
    %219 = arith.negf %218 : vector<2x32xf32>
    %220 = math.exp %219 : vector<2x32xf32>
    %cst_39 = arith.constant 1.000000e+00 : f32
    %221 = vector.broadcast %cst_39 : f32 to vector<2x32xf32>
    %222 = arith.addf %221, %220 : vector<2x32xf32>
    %223 = arith.divf %221, %222 : vector<2x32xf32>
    %224 = vector.extract_strided_slice %214 {offsets = [0, 32], sizes = [2, 32], strides = [1, 1]} : vector<2x96xf32> to vector<2x32xf32>
    %225 = vector.extract_strided_slice %215 {offsets = [0, 32], sizes = [2, 32], strides = [1, 1]} : vector<2x96xf32> to vector<2x32xf32>
    %226 = arith.addf %224, %225 : vector<2x32xf32>
    %227 = arith.negf %226 : vector<2x32xf32>
    %228 = math.exp %227 : vector<2x32xf32>
    %cst_40 = arith.constant 1.000000e+00 : f32
    %229 = vector.broadcast %cst_40 : f32 to vector<2x32xf32>
    %230 = arith.addf %229, %228 : vector<2x32xf32>
    %231 = arith.divf %229, %230 : vector<2x32xf32>
    %232 = vector.extract_strided_slice %214 {offsets = [0, 64], sizes = [2, 32], strides = [1, 1]} : vector<2x96xf32> to vector<2x32xf32>
    %233 = vector.extract_strided_slice %215 {offsets = [0, 64], sizes = [2, 32], strides = [1, 1]} : vector<2x96xf32> to vector<2x32xf32>
    %234 = arith.addf %233, %9 : vector<2x32xf32>
    %235 = arith.mulf %223, %234 : vector<2x32xf32>
    %236 = arith.addf %232, %235 : vector<2x32xf32>
    %237 = math.tanh %236 : vector<2x32xf32>
    %cst_41 = arith.constant 1.000000e+00 : f32
    %238 = vector.broadcast %cst_41 : f32 to vector<2x32xf32>
    %239 = arith.subf %238, %231 : vector<2x32xf32>
    %240 = arith.mulf %239, %237 : vector<2x32xf32>
    %241 = arith.mulf %231, %213 : vector<2x32xf32>
    %242 = arith.addf %240, %241 : vector<2x32xf32>
    %c0_42 = arith.constant 0 : index
    %c0_43 = arith.constant 0 : index
    %243 = vector.load %arg5[%c0_42, %c0_43] : memref<32x8xf32, #tpu.memory_space<vmem>>, vector<32x8xf32>
    %cst_44 = arith.constant dense<0.000000e+00> : vector<2x8xf32>
    %244 = tpu.matmul %242, %243, %cst_44 {dimension_numbers = #tpu.dot_dimension_numbers<[1], [0], [0], [1], [0, 0, 1, 1], [], []>} : vector<2x32xf32>, vector<32x8xf32>, vector<2x8xf32> -> vector<2x8xf32>
    %c0_45 = arith.constant 0 : index
    %c0_46 = arith.constant 0 : index
    %245 = vector.load %arg6[%c0_45, %c0_46] : memref<1x8xf32, #tpu.memory_space<vmem>>, vector<1x8xf32>
    %246 = vector.broadcast %245 : vector<1x8xf32> to vector<2x8xf32>
    %247 = arith.addf %244, %246 : vector<2x8xf32>
    %c0_47 = arith.constant 0 : index
    %c0_48 = arith.constant 0 : index
    %248 = vector.load %arg7[%c0_47, %c0_48] : memref<2x8xf32, #tpu.memory_space<vmem>>, vector<2x8xf32>
    tpu.vector_store %arg7[%c0_47, %c0_48], %247 {strides = array<i32>} : memref<2x8xf32, #tpu.memory_space<vmem>>, vector<2x8xf32>,
    return
  }
}

</mosaic_0001>

<llo_original>
// kernel: tpu_custom_call.1
$region0: #{tpu_custom_call.1}
  #allocation0 [shape = 'u32[]', space=smem, size = 0x4, offset = 0x4, fixed_abs, tag = 'smem constant byte address 0x4 - core index']
  #allocation1 [shape = 'u32[144,128]{1,0:T(1,128)}', space=vmem, size = 0x12000, scoped, tag = 'internal scratch']
  %s0 = inlined_call_operand.vmem [shape: f32[16,4], index: 0, kind: input, shape index: {}]
  %s1 = inlined_call_operand.vmem [shape: f32[4,96], index: 1, kind: input, shape index: {}]
  %s2 = inlined_call_operand.vmem [shape: f32[32,96], index: 2, kind: input, shape index: {}]
  %s3 = inlined_call_operand.vmem [shape: f32[1,96], index: 3, kind: input, shape index: {}]
  %s4 = inlined_call_operand.vmem [shape: f32[1,32], index: 4, kind: input, shape index: {}]
  %s5 = inlined_call_operand.vmem [shape: f32[32,8], index: 5, kind: input, shape index: {}]
  %s6 = inlined_call_operand.vmem [shape: f32[1,8], index: 6, kind: input, shape index: {}]
  %s7 = inlined_call_operand.hbm [shape: f32[2,8], index: 7, kind: output, shape index: {}]
  %s8 = sld [smem:[#allocation0]]
  $region38: #{tpu_custom_call.1} parent=0
    _
  %s10 = ssub.s32 1, %s8
  %s11 = scalar_select 0, %s10, %s8
  $region1: #{tpu_custom_call.1} parent=0
    #allocation2 [shape = 'u8[1024]{0}', space=vmem, size = 0x400, scoped, tag = 'output window, operand 0, single buffered']
    #allocation3 [shape = 's32[1]{0}', space=sflag, size = 0x4, scoped, tag = 'scoped memory for tpu_custom_call.1']
    %12 = vsyncpa [#allocation3], 0
    // Predicated region
    $region2: #{tpu_custom_call.1} parent=1 // pred_check
      _
    $region3: #{tpu_custom_call.1} parent=1 // pred_check_branch
      %14 = sbr.rel (0) target = $region5
    $region4: #{tpu_custom_call.1} parent=1 // pred_region
      _
    $region5: #{tpu_custom_call.1} parent=1 // pred_fallthru
      _
    // Predicated region
    $region6: #{tpu_custom_call.1} parent=1 // pred_check
      _
    $region7: #{tpu_custom_call.1} parent=1 // pred_check_branch
      %16 = sbr.rel (0) target = $region9
    $region8: #{tpu_custom_call.1} parent=1 // pred_region
      _
    $region9: #{tpu_custom_call.1} parent=1 // pred_fallthru
      _
    // Predicated region
    $region10: #{tpu_custom_call.1} parent=1 // pred_check
      _
    $region11: #{tpu_custom_call.1} parent=1 // pred_check_branch
      %18 = sbr.rel (0) target = $region13
    $region12: #{tpu_custom_call.1} parent=1 // pred_region
      _
    $region13: #{tpu_custom_call.1} parent=1 // pred_fallthru
      _
    // Predicated region
    $region14: #{tpu_custom_call.1} parent=1 // pred_check
      _
    $region15: #{tpu_custom_call.1} parent=1 // pred_check_branch
      %20 = sbr.rel (0) target = $region17
    $region16: #{tpu_custom_call.1} parent=1 // pred_region
      _
    $region17: #{tpu_custom_call.1} parent=1 // pred_fallthru
      _
    // Predicated region
    $region18: #{tpu_custom_call.1} parent=1 // pred_check
      _
    $region19: #{tpu_custom_call.1} parent=1 // pred_check_branch
      %22 = sbr.rel (0) target = $region21
    $region20: #{tpu_custom_call.1} parent=1 // pred_region
      _
    $region21: #{tpu_custom_call.1} parent=1 // pred_fallthru
      _
    // Predicated region
    $region22: #{tpu_custom_call.1} parent=1 // pred_check
      _
    $region23: #{tpu_custom_call.1} parent=1 // pred_check_branch
      %24 = sbr.rel (0) target = $region25
    $region24: #{tpu_custom_call.1} parent=1 // pred_region
      _
    $region25: #{tpu_custom_call.1} parent=1 // pred_fallthru
      _
    // Predicated region
    $region26: #{tpu_custom_call.1} parent=1 // pred_check
      _
    $region27: #{tpu_custom_call.1} parent=1 // pred_check_branch
      %26 = sbr.rel (0) target = $region29
    $region28: #{tpu_custom_call.1} parent=1 // pred_region
      _
    $region29: #{tpu_custom_call.1} parent=1 // pred_fallthru
      _
    %v27 = vld [vmem:[%s0] sm:$0xff]
    %v28 = vld [vmem:[%s0 + $0x8] sm:$0xff]
    %v29 = vld [vmem:[%s1] sm:$0xf]
    %v30 = vld [vmem:[%s3] sm:$0x1]
    %v32 = vlaneseq
    %v33 = vshrl.u32 %v32, 7
    %v34 = vsub.s32 0, %v33
    %v35 = vrot.slane %v30, %v34
    %vm37 = vcmask 31744
    %v39 = vsel %vm37, %v27, 0
    %v42 = vsel %vm37, %v28, 0
    %vm44 = vcmask 1043456
    %v46 = vsel %vm44, %v29, 0
    %48 = vmatprep.subr.mxu0 0.0
    %49 = vmatpush1.msra.mxu0 0.0
    %50 = vmatprep.subr.mxu0 0.0
    %51 = vmatpush1.msra.mxu0 0.0
    %52 = vmatprep.subr.mxu0 0.0
    %53 = vmatpush1.msra.mxu0 0.0
    %54 = vmatprep.subr.mxu0 0.0
    %55 = vmatpush1.msra.mxu0 0.0
    %56 = vmatprep.subr.mxu0 0.0
    %57 = vmatpush1.msra.mxu0 0.0
    %58 = vmatprep.subr.mxu0 0.0
    %59 = vmatpush1.msra.mxu0 0.0
    %60 = vmatprep.subr.mxu0 0.0
    %61 = vmatpush1.msra.mxu0 0.0
    %62 = vmatprep.subr.mxu0 0.0
    %63 = vmatpush1.msra.mxu0 0.0
    %64 = vmatprep.subr.mxu0 0.0
    %65 = vmatpush1.msra.mxu0 0.0
    %66 = vmatprep.subr.mxu0 0.0
    %67 = vmatpush1.msra.mxu0 0.0
    %68 = vmatprep.subr.mxu0 0.0
    %69 = vmatpush1.msra.mxu0 0.0
    %70 = vmatprep.subr.mxu0 0.0
    %71 = vmatpush1.msra.mxu0 0.0
    %72 = vmatprep.subr.mxu0 0.0
    %73 = vmatpush1.msra.mxu0 0.0
    %74 = vmatprep.subr.mxu0 0.0
    %75 = vmatpush1.msra.mxu0 0.0
    %76 = vmatprep.subr.mxu0 0.0
    %77 = vmatpush1.msra.mxu0 0.0
    %78 = vmatprep.subr.mxu0 0.0
    %79 = vmatpush1.msra.mxu0 %v46
    %80 = vmatprep.subr.mxu0 0.0
    %81 = vmatpush2.msra.mxu0 0.0
    %82 = vmatprep.subr.mxu0 0.0
    %83 = vmatpush2.msra.mxu0 0.0
    %84 = vmatprep.subr.mxu0 0.0
    %85 = vmatpush2.msra.mxu0 0.0
    %86 = vmatprep.subr.mxu0 0.0
    %87 = vmatpush2.msra.mxu0 0.0
    %88 = vmatprep.subr.mxu0 0.0
    %89 = vmatpush2.msra.mxu0 0.0
    %90 = vmatprep.subr.mxu0 0.0
    %91 = vmatpush2.msra.mxu0 0.0
    %92 = vmatprep.subr.mxu0 0.0
    %93 = vmatpush2.msra.mxu0 0.0
    %94 = vmatprep.subr.mxu0 0.0
    %95 = vmatpush2.msra.mxu0 0.0
    %96 = vmatprep.subr.mxu0 0.0
    %97 = vmatpush2.msra.mxu0 0.0
    %98 = vmatprep.subr.mxu0 0.0
    %99 = vmatpush2.msra.mxu0 0.0
    %100 = vmatprep.subr.mxu0 0.0
    %101 = vmatpush2.msra.mxu0 0.0
    %102 = vmatprep.subr.mxu0 0.0
    %103 = vmatpush2.msra.mxu0 0.0
    %104 = vmatprep.subr.mxu0 0.0
    %105 = vmatpush2.msra.mxu0 0.0
    %106 = vmatprep.subr.mxu0 0.0
    %107 = vmatpush2.msra.mxu0 0.0
    %108 = vmatprep.subr.mxu0 0.0
    %109 = vmatpush2.msra.mxu0 0.0
    %110 = vmatprep.subr.mxu0 0.0
    %111 = vmatpush2.msra.mxu0 0.0
    %112 = vmatprep.mubr.f32.mxu0 0.0
    %113 = vmatmul.mubr.f32.gmra.mxu0 %v39
    %v114 = vpop.f32.mrf.mxu0
    %v115 = vadd.f32 %v35, %v114
    %v116 = vpop.f32.mrf.mxu0
    %117 = vmatprep.mubr.f32.mxu0 0.0
    %118 = vmatmul.mubr.f32.gmra.mxu0 %v42
    %v119 = vpop.f32.mrf.mxu0
    %v120 = vadd.f32 %v35, %v119
    %v121 = vpop.f32.mrf.mxu0
    %122 = vdwg.mxu0
    %v123 = vld [vmem:[%s2] sm:$0xff]
    %v124 = vld [vmem:[%s2 + $0x8] sm:$0xff]
    %v125 = vld [vmem:[%s2 + $0x10] sm:$0xff]
    %v126 = vld [vmem:[%s2 + $0x18] sm:$0xff]
    %v127 = vld [vmem:[%s4] sm:$0x1]
    %v129 = vlaneseq
    %v130 = vshrl.u32 %v129, 7
    %v131 = vsub.s32 0, %v130
    %v132 = vrot.slane %v127, %v131
    %vm133 = vcmask 261120
    %v135 = vsel %vm133, 0.0, 0
    %137 = vmatprep.subr.mxu0 0.0
    %138 = vmatpush1.msra.mxu0 0.0
    %139 = vmatprep.subr.mxu0 0.0
    %140 = vmatpush1.msra.mxu0 0.0
    %141 = vmatprep.subr.mxu0 0.0
    %142 = vmatpush1.msra.mxu0 0.0
    %143 = vmatprep.subr.mxu0 0.0
    %144 = vmatpush1.msra.mxu0 0.0
    %145 = vmatprep.subr.mxu0 0.0
    %146 = vmatpush1.msra.mxu0 0.0
    %147 = vmatprep.subr.mxu0 0.0
    %148 = vmatpush1.msra.mxu0 0.0
    %149 = vmatprep.subr.mxu0 0.0
    %150 = vmatpush1.msra.mxu0 0.0
    %151 = vmatprep.subr.mxu0 0.0
    %152 = vmatpush1.msra.mxu0 0.0
    %153 = vmatprep.subr.mxu0 0.0
    %154 = vmatpush1.msra.mxu0 0.0
    %155 = vmatprep.subr.mxu0 0.0
    %156 = vmatpush1.msra.mxu0 0.0
    %157 = vmatprep.subr.mxu0 0.0
    %158 = vmatpush1.msra.mxu0 0.0
    %159 = vmatprep.subr.mxu0 0.0
    %160 = vmatpush1.msra.mxu0 0.0
    %161 = vmatprep.subr.mxu0 0.0
    %162 = vmatpush1.msra.mxu0 %v126
    %163 = vmatprep.subr.mxu0 0.0
    %164 = vmatpush1.msra.mxu0 %v125
    %165 = vmatprep.subr.mxu0 0.0
    %166 = vmatpush1.msra.mxu0 %v124
    %167 = vmatprep.subr.mxu0 0.0
    %168 = vmatpush1.msra.mxu0 %v123
    %169 = vmatprep.subr.mxu0 0.0
    %170 = vmatpush2.msra.mxu0 0.0
    %171 = vmatprep.subr.mxu0 0.0
    %172 = vmatpush2.msra.mxu0 0.0
    %173 = vmatprep.subr.mxu0 0.0
    %174 = vmatpush2.msra.mxu0 0.0
    %175 = vmatprep.subr.mxu0 0.0
    %176 = vmatpush2.msra.mxu0 0.0
    %177 = vmatprep.subr.mxu0 0.0
    %178 = vmatpush2.msra.mxu0 0.0
    %179 = vmatprep.subr.mxu0 0.0
    %180 = vmatpush2.msra.mxu0 0.0
    %181 = vmatprep.subr.mxu0 0.0
    %182 = vmatpush2.msra.mxu0 0.0
    %183 = vmatprep.subr.mxu0 0.0
    %184 = vmatpush2.msra.mxu0 0.0
    %185 = vmatprep.subr.mxu0 0.0
    %186 = vmatpush2.msra.mxu0 0.0
    %187 = vmatprep.subr.mxu0 0.0
    %188 = vmatpush2.msra.mxu0 0.0
    %189 = vmatprep.subr.mxu0 0.0
    %190 = vmatpush2.msra.mxu0 0.0
    %191 = vmatprep.subr.mxu0 0.0
    %192 = vmatpush2.msra.mxu0 0.0
    %193 = vmatprep.subr.mxu0 0.0
    %194 = vmatpush2.msra.mxu0 0.0
    %195 = vmatprep.subr.mxu0 0.0
    %196 = vmatpush2.msra.mxu0 0.0
    %197 = vmatprep.subr.mxu0 0.0
    %198 = vmatpush2.msra.mxu0 0.0
    %199 = vmatprep.subr.mxu0 0.0
    %200 = vmatpush2.msra.mxu0 0.0
    %201 = vmatprep.mubr.f32.mxu0 0.0
    %202 = vmatmul.mubr.f32.gmra.mxu0 %v135
    %v203 = vpop.f32.mrf.mxu0
    %v204 = vadd.f32 0.0, %v203
    %v205 = vpop.f32.mrf.mxu0
    %206 = vdwg.mxu0
    %v207 = vadd.f32 %v115, %v204
    %v208 = vxor.u32 %v207, 2147483648
    %v209 = vmul.f32 %v208, 1.442695
    %v210 = vpow.pop %v209
    %v211 = vadd.f32 %v210, 1.0
    %v212 = vrcp.pop %v211
    %v213 = vmul.f32 1.0, %v212
    %214 = vrot.lane.b32.xlu0 %v132, 64
    %v215 = vpop.permute.xlu0 %214
    %v217 = vadd.f32 %v204, %v215
    %219 = vrot.lane.b32.xlu0 %v217, 64
    %v220 = vpop.permute.xlu0 %219
    %v222 = vmul.f32 %v213, %v220
    %224 = vrot.lane.b32.xlu0 %v222, 64
    %v225 = vpop.permute.xlu0 %224
    %v227 = vadd.f32 %v115, %v225
    %v228 = vtanh.pop %v227
    %v229 = vsub.f32 1.0, %v213
    %231 = vrot.lane.b32.xlu0 %v228, 96
    %v232 = vpop.permute.xlu0 %231
    %v234 = vmul.f32 %v229, %v232
    %v235 = vmul.f32 %v213, 0.0
    %v236 = vadd.f32 %v234, %v235
    %238 = vrot.lane.b32.xlu0 %v236, 96
    %v239 = vpop.permute.xlu0 %238
    %v240 = vsel %vm133, %v239, 0
    %242 = vmatprep.subr.mxu0 0.0
    %243 = vmatpush1.msra.mxu0 0.0
    %244 = vmatprep.subr.mxu0 0.0
    %245 = vmatpush1.msra.mxu0 0.0
    %246 = vmatprep.subr.mxu0 0.0
    %247 = vmatpush1.msra.mxu0 0.0
    %248 = vmatprep.subr.mxu0 0.0
    %249 = vmatpush1.msra.mxu0 0.0
    %250 = vmatprep.subr.mxu0 0.0
    %251 = vmatpush1.msra.mxu0 0.0
    %252 = vmatprep.subr.mxu0 0.0
    %253 = vmatpush1.msra.mxu0 0.0
    %254 = vmatprep.subr.mxu0 0.0
    %255 = vmatpush1.msra.mxu0 0.0
    %256 = vmatprep.subr.mxu0 0.0
    %257 = vmatpush1.msra.mxu0 0.0
    %258 = vmatprep.subr.mxu0 0.0
    %259 = vmatpush1.msra.mxu0 0.0
    %260 = vmatprep.subr.mxu0 0.0
    %261 = vmatpush1.msra.mxu0 0.0
    %262 = vmatprep.subr.mxu0 0.0
    %263 = vmatpush1.msra.mxu0 0.0
    %264 = vmatprep.subr.mxu0 0.0
    %265 = vmatpush1.msra.mxu0 0.0
    %266 = vmatprep.subr.mxu0 0.0
    %267 = vmatpush1.msra.mxu0 %v126
    %268 = vmatprep.subr.mxu0 0.0
    %269 = vmatpush1.msra.mxu0 %v125
    %270 = vmatprep.subr.mxu0 0.0
    %271 = vmatpush1.msra.mxu0 %v124
    %272 = vmatprep.subr.mxu0 0.0
    %273 = vmatpush1.msra.mxu0 %v123
    %274 = vmatprep.subr.mxu0 0.0
    %275 = vmatpush2.msra.mxu0 0.0
    %276 = vmatprep.subr.mxu0 0.0
    %277 = vmatpush2.msra.mxu0 0.0
    %278 = vmatprep.subr.mxu0 0.0
    %279 = vmatpush2.msra.mxu0 0.0
    %280 = vmatprep.subr.mxu0 0.0
    %281 = vmatpush2.msra.mxu0 0.0
    %282 = vmatprep.subr.mxu0 0.0
    %283 = vmatpush2.msra.mxu0 0.0
    %284 = vmatprep.subr.mxu0 0.0
    %285 = vmatpush2.msra.mxu0 0.0
    %286 = vmatprep.subr.mxu0 0.0
    %287 = vmatpush2.msra.mxu0 0.0
    %288 = vmatprep.subr.mxu0 0.0
    %289 = vmatpush2.msra.mxu0 0.0
    %290 = vmatprep.subr.mxu0 0.0
    %291 = vmatpush2.msra.mxu0 0.0
    %292 = vmatprep.subr.mxu0 0.0
    %293 = vmatpush2.msra.mxu0 0.0
    %294 = vmatprep.subr.mxu0 0.0
    %295 = vmatpush2.msra.mxu0 0.0
    %296 = vmatprep.subr.mxu0 0.0
    %297 = vmatpush2.msra.mxu0 0.0
    %298 = vmatprep.subr.mxu0 0.0
    %299 = vmatpush2.msra.mxu0 0.0
    %300 = vmatprep.subr.mxu0 0.0
    %301 = vmatpush2.msra.mxu0 0.0
    %302 = vmatprep.subr.mxu0 0.0
    %303 = vmatpush2.msra.mxu0 0.0
    %304 = vmatprep.subr.mxu0 0.0
    %305 = vmatpush2.msra.mxu0 0.0
    %306 = vmatprep.mubr.f32.mxu0 0.0
    %307 = vmatmul.mubr.f32.gmra.mxu0 %v240
    %v308 = vpop.f32.mrf.mxu0
    %v309 = vadd.f32 0.0, %v308
    %v310 = vpop.f32.mrf.mxu0
    %311 = vdwg.mxu0
    %v313 = vrot.slane %v309, 6
    %v315 = vadd.f32 %v115, %v313
    %v316 = vxor.u32 %v315, 2147483648
    %v317 = vmul.f32 %v316, 1.442695
    %v318 = vpow.pop %v317
    %v319 = vadd.f32 %v318, 1.0
    %v320 = vrcp.pop %v319
    %v321 = vmul.f32 1.0, %v320
    %v322 = vadd.f32 %v309, %v215
    %v324 = vrot.slane %v322, 6
    %325 = vrot.lane.b32.xlu0 %v324, 64
    %v326 = vpop.permute.xlu0 %325
    %v328 = vmul.f32 %v321, %v326
    %330 = vrot.lane.b32.xlu0 %v328, 64
    %v331 = vpop.permute.xlu0 %330
    %v333 = vadd.f32 %v115, %v331
    %v334 = vtanh.pop %v333
    %v335 = vsub.f32 1.0, %v321
    %337 = vrot.lane.b32.xlu0 %v334, 96
    %v338 = vpop.permute.xlu0 %337
    %v340 = vmul.f32 %v335, %v338
    %v341 = vrot.slane %v236, 6
    %v343 = vmul.f32 %v321, %v341
    %v344 = vadd.f32 %v340, %v343
    %v346 = vrot.slane %v344, 2
    %347 = vrot.lane.b32.xlu0 %v346, 96
    %v348 = vpop.permute.xlu0 %347
    %v349 = vsel %vm133, %v348, 0
    %351 = vmatprep.subr.mxu0 0.0
    %352 = vmatpush1.msra.mxu0 0.0
    %353 = vmatprep.subr.mxu0 0.0
    %354 = vmatpush1.msra.mxu0 0.0
    %355 = vmatprep.subr.mxu0 0.0
    %356 = vmatpush1.msra.mxu0 0.0
    %357 = vmatprep.subr.mxu0 0.0
    %358 = vmatpush1.msra.mxu0 0.0
    %359 = vmatprep.subr.mxu0 0.0
    %360 = vmatpush1.msra.mxu0 0.0
    %361 = vmatprep.subr.mxu0 0.0
    %362 = vmatpush1.msra.mxu0 0.0
    %363 = vmatprep.subr.mxu0 0.0
    %364 = vmatpush1.msra.mxu0 0.0
    %365 = vmatprep.subr.mxu0 0.0
    %366 = vmatpush1.msra.mxu0 0.0
    %367 = vmatprep.subr.mxu0 0.0
    %368 = vmatpush1.msra.mxu0 0.0
    %369 = vmatprep.subr.mxu0 0.0
    %370 = vmatpush1.msra.mxu0 0.0
    %371 = vmatprep.subr.mxu0 0.0
    %372 = vmatpush1.msra.mxu0 0.0
    %373 = vmatprep.subr.mxu0 0.0
    %374 = vmatpush1.msra.mxu0 0.0
    %375 = vmatprep.subr.mxu0 0.0
    %376 = vmatpush1.msra.mxu0 %v126
    %377 = vmatprep.subr.mxu0 0.0
    %378 = vmatpush1.msra.mxu0 %v125
    %379 = vmatprep.subr.mxu0 0.0
    %380 = vmatpush1.msra.mxu0 %v124
    %381 = vmatprep.subr.mxu0 0.0
    %382 = vmatpush1.msra.mxu0 %v123
    %383 = vmatprep.subr.mxu0 0.0
    %384 = vmatpush2.msra.mxu0 0.0
    %385 = vmatprep.subr.mxu0 0.0
    %386 = vmatpush2.msra.mxu0 0.0
    %387 = vmatprep.subr.mxu0 0.0
    %388 = vmatpush2.msra.mxu0 0.0
    %389 = vmatprep.subr.mxu0 0.0
    %390 = vmatpush2.msra.mxu0 0.0
    %391 = vmatprep.subr.mxu0 0.0
    %392 = vmatpush2.msra.mxu0 0.0
    %393 = vmatprep.subr.mxu0 0.0
    %394 = vmatpush2.msra.mxu0 0.0
    %395 = vmatprep.subr.mxu0 0.0
    %396 = vmatpush2.msra.mxu0 0.0
    %397 = vmatprep.subr.mxu0 0.0
    %398 = vmatpush2.msra.mxu0 0.0
    %399 = vmatprep.subr.mxu0 0.0
    %400 = vmatpush2.msra.mxu0 0.0
    %401 = vmatprep.subr.mxu0 0.0
    %402 = vmatpush2.msra.mxu0 0.0
    %403 = vmatprep.subr.mxu0 0.0
    %404 = vmatpush2.msra.mxu0 0.0
    %405 = vmatprep.subr.mxu0 0.0
    %406 = vmatpush2.msra.mxu0 0.0
    %407 = vmatprep.subr.mxu0 0.0
    %408 = vmatpush2.msra.mxu0 0.0
    %409 = vmatprep.subr.mxu0 0.0
    %410 = vmatpush2.msra.mxu0 0.0
    %411 = vmatprep.subr.mxu0 0.0
    %412 = vmatpush2.msra.mxu0 0.0
    %413 = vmatprep.subr.mxu0 0.0
    %414 = vmatpush2.msra.mxu0 0.0
    %415 = vmatprep.mubr.f32.mxu0 0.0
    %416 = vmatmul.mubr.f32.gmra.mxu0 %v349
    %v417 = vpop.f32.mrf.mxu0
    %v418 = vadd.f32 0.0, %v417
    %v419 = vpop.f32.mrf.mxu0
    %420 = vdwg.mxu0
    %v422 = vrot.slane %v418, 4
    %v424 = vadd.f32 %v115, %v422
    %v425 = vxor.u32 %v424, 2147483648
    %v426 = vmul.f32 %v425, 1.442695
    %v427 = vpow.pop %v426
    %v428 = vadd.f32 %v427, 1.0
    %v429 = vrcp.pop %v428
    %v430 = vmul.f32 1.0, %v429
    %v431 = vadd.f32 %v418, %v215
    %v433 = vrot.slane %v431, 4
    %434 = vrot.lane.b32.xlu0 %v433, 64
    %v435 = vpop.permute.xlu0 %434
    %v437 = vmul.f32 %v430, %v435
    %439 = vrot.lane.b32.xlu0 %v437, 64
    %v440 = vpop.permute.xlu0 %439
    %v442 = vadd.f32 %v115, %v440
    %v443 = vtanh.pop %v442
    %v444 = vsub.f32 1.0, %v430
    %446 = vrot.lane.b32.xlu0 %v443, 96
    %v447 = vpop.permute.xlu0 %446
    %v449 = vmul.f32 %v444, %v447
    %v450 = vrot.slane %v344, 6
    %v452 = vmul.f32 %v430, %v450
    %v453 = vadd.f32 %v449, %v452
    %v455 = vrot.slane %v453, 4
    %456 = vrot.lane.b32.xlu0 %v455, 96
    %v457 = vpop.permute.xlu0 %456
    %v458 = vsel %vm133, %v457, 0
    %460 = vmatprep.subr.mxu0 0.0
    %461 = vmatpush1.msra.mxu0 0.0
    %462 = vmatprep.subr.mxu0 0.0
    %463 = vmatpush1.msra.mxu0 0.0
    %464 = vmatprep.subr.mxu0 0.0
    %465 = vmatpush1.msra.mxu0 0.0
    %466 = vmatprep.subr.mxu0 0.0
    %467 = vmatpush1.msra.mxu0 0.0
    %468 = vmatprep.subr.mxu0 0.0
    %469 = vmatpush1.msra.mxu0 0.0
    %470 = vmatprep.subr.mxu0 0.0
    %471 = vmatpush1.msra.mxu0 0.0
    %472 = vmatprep.subr.mxu0 0.0
    %473 = vmatpush1.msra.mxu0 0.0
    %474 = vmatprep.subr.mxu0 0.0
    %475 = vmatpush1.msra.mxu0 0.0
    %476 = vmatprep.subr.mxu0 0.0
    %477 = vmatpush1.msra.mxu0 0.0
    %478 = vmatprep.subr.mxu0 0.0
    %479 = vmatpush1.msra.mxu0 0.0
    %480 = vmatprep.subr.mxu0 0.0
    %481 = vmatpush1.msra.mxu0 0.0
    %482 = vmatprep.subr.mxu0 0.0
    %483 = vmatpush1.msra.mxu0 0.0
    %484 = vmatprep.subr.mxu0 0.0
    %485 = vmatpush1.msra.mxu0 %v126
    %486 = vmatprep.subr.mxu0 0.0
    %487 = vmatpush1.msra.mxu0 %v125
    %488 = vmatprep.subr.mxu0 0.0
    %489 = vmatpush1.msra.mxu0 %v124
    %490 = vmatprep.subr.mxu0 0.0
    %491 = vmatpush1.msra.mxu0 %v123
    %492 = vmatprep.subr.mxu0 0.0
    %493 = vmatpush2.msra.mxu0 0.0
    %494 = vmatprep.subr.mxu0 0.0
    %495 = vmatpush2.msra.mxu0 0.0
    %496 = vmatprep.subr.mxu0 0.0
    %497 = vmatpush2.msra.mxu0 0.0
    %498 = vmatprep.subr.mxu0 0.0
    %499 = vmatpush2.msra.mxu0 0.0
    %500 = vmatprep.subr.mxu0 0.0
    %501 = vmatpush2.msra.mxu0 0.0
    %502 = vmatprep.subr.mxu0 0.0
    %503 = vmatpush2.msra.mxu0 0.0
    %504 = vmatprep.subr.mxu0 0.0
    %505 = vmatpush2.msra.mxu0 0.0
    %506 = vmatprep.subr.mxu0 0.0
    %507 = vmatpush2.msra.mxu0 0.0
    %508 = vmatprep.subr.mxu0 0.0
    %509 = vmatpush2.msra.mxu0 0.0
    %510 = vmatprep.subr.mxu0 0.0
    %511 = vmatpush2.msra.mxu0 0.0
    %512 = vmatprep.subr.mxu0 0.0
    %513 = vmatpush2.msra.mxu0 0.0
    %514 = vmatprep.subr.mxu0 0.0
    %515 = vmatpush2.msra.mxu0 0.0
    %516 = vmatprep.subr.mxu0 0.0
    %517 = vmatpush2.msra.mxu0 0.0
    %518 = vmatprep.subr.mxu0 0.0
    %519 = vmatpush2.msra.mxu0 0.0
    %520 = vmatprep.subr.mxu0 0.0
    %521 = vmatpush2.msra.mxu0 0.0
    %522 = vmatprep.subr.mxu0 0.0
    %523 = vmatpush2.msra.mxu0 0.0
    %524 = vmatprep.mubr.f32.mxu0 0.0
    %525 = vmatmul.mubr.f32.gmra.mxu0 %v458
    %v526 = vpop.f32.mrf.mxu0
    %v527 = vadd.f32 0.0, %v526
    %v528 = vpop.f32.mrf.mxu0
    %529 = vdwg.mxu0
    %v531 = vrot.slane %v527, 2
    %v533 = vadd.f32 %v115, %v531
    %v534 = vxor.u32 %v533, 2147483648
    %v535 = vmul.f32 %v534, 1.442695
    %v536 = vpow.pop %v535
    %v537 = vadd.f32 %v536, 1.0
    %v538 = vrcp.pop %v537
    %v539 = vmul.f32 1.0, %v538
    %v540 = vadd.f32 %v527, %v215
    %v542 = vrot.slane %v540, 2
    %543 = vrot.lane.b32.xlu0 %v542, 64
    %v544 = vpop.permute.xlu0 %543
    %v546 = vmul.f32 %v539, %v544
    %548 = vrot.lane.b32.xlu0 %v546, 64
    %v549 = vpop.permute.xlu0 %548
    %v551 = vadd.f32 %v115, %v549
    %v552 = vtanh.pop %v551
    %v553 = vsub.f32 1.0, %v539
    %555 = vrot.lane.b32.xlu0 %v552, 96
    %v556 = vpop.permute.xlu0 %555
    %v558 = vmul.f32 %v553, %v556
    %v559 = vrot.slane %v453, 6
    %v561 = vmul.f32 %v539, %v559
    %v562 = vadd.f32 %v558, %v561
    %v564 = vrot.slane %v562, 6
    %565 = vrot.lane.b32.xlu0 %v564, 96
    %v566 = vpop.permute.xlu0 %565
    %v567 = vsel %vm133, %v566, 0
    %569 = vmatprep.subr.mxu0 0.0
    %570 = vmatpush1.msra.mxu0 0.0
    %571 = vmatprep.subr.mxu0 0.0
    %572 = vmatpush1.msra.mxu0 0.0
    %573 = vmatprep.subr.mxu0 0.0
    %574 = vmatpush1.msra.mxu0 0.0
    %575 = vmatprep.subr.mxu0 0.0
    %576 = vmatpush1.msra.mxu0 0.0
    %577 = vmatprep.subr.mxu0 0.0
    %578 = vmatpush1.msra.mxu0 0.0
    %579 = vmatprep.subr.mxu0 0.0
    %580 = vmatpush1.msra.mxu0 0.0
    %581 = vmatprep.subr.mxu0 0.0
    %582 = vmatpush1.msra.mxu0 0.0
    %583 = vmatprep.subr.mxu0 0.0
    %584 = vmatpush1.msra.mxu0 0.0
    %585 = vmatprep.subr.mxu0 0.0
    %586 = vmatpush1.msra.mxu0 0.0
    %587 = vmatprep.subr.mxu0 0.0
    %588 = vmatpush1.msra.mxu0 0.0
    %589 = vmatprep.subr.mxu0 0.0
    %590 = vmatpush1.msra.mxu0 0.0
    %591 = vmatprep.subr.mxu0 0.0
    %592 = vmatpush1.msra.mxu0 0.0
    %593 = vmatprep.subr.mxu0 0.0
    %594 = vmatpush1.msra.mxu0 %v126
    %595 = vmatprep.subr.mxu0 0.0
    %596 = vmatpush1.msra.mxu0 %v125
    %597 = vmatprep.subr.mxu0 0.0
    %598 = vmatpush1.msra.mxu0 %v124
    %599 = vmatprep.subr.mxu0 0.0
    %600 = vmatpush1.msra.mxu0 %v123
    %601 = vmatprep.subr.mxu0 0.0
    %602 = vmatpush2.msra.mxu0 0.0
    %603 = vmatprep.subr.mxu0 0.0
    %604 = vmatpush2.msra.mxu0 0.0
    %605 = vmatprep.subr.mxu0 0.0
    %606 = vmatpush2.msra.mxu0 0.0
    %607 = vmatprep.subr.mxu0 0.0
    %608 = vmatpush2.msra.mxu0 0.0
    %609 = vmatprep.subr.mxu0 0.0
    %610 = vmatpush2.msra.mxu0 0.0
    %611 = vmatprep.subr.mxu0 0.0
    %612 = vmatpush2.msra.mxu0 0.0
    %613 = vmatprep.subr.mxu0 0.0
    %614 = vmatpush2.msra.mxu0 0.0
    %615 = vmatprep.subr.mxu0 0.0
    %616 = vmatpush2.msra.mxu0 0.0
    %617 = vmatprep.subr.mxu0 0.0
    %618 = vmatpush2.msra.mxu0 0.0
    %619 = vmatprep.subr.mxu0 0.0
    %620 = vmatpush2.msra.mxu0 0.0
    %621 = vmatprep.subr.mxu0 0.0
    %622 = vmatpush2.msra.mxu0 0.0
    %623 = vmatprep.subr.mxu0 0.0
    %624 = vmatpush2.msra.mxu0 0.0
    %625 = vmatprep.subr.mxu0 0.0
    %626 = vmatpush2.msra.mxu0 0.0
    %627 = vmatprep.subr.mxu0 0.0
    %628 = vmatpush2.msra.mxu0 0.0
    %629 = vmatprep.subr.mxu0 0.0
    %630 = vmatpush2.msra.mxu0 0.0
    %631 = vmatprep.subr.mxu0 0.0
    %632 = vmatpush2.msra.mxu0 0.0
    %633 = vmatprep.mubr.f32.mxu0 0.0
    %634 = vmatmul.mubr.f32.gmra.mxu0 %v567
    %v635 = vpop.f32.mrf.mxu0
    %v636 = vadd.f32 0.0, %v635
    %v637 = vpop.f32.mrf.mxu0
    %638 = vdwg.mxu0
    %v639 = vadd.f32 %v120, %v636
    %v640 = vxor.u32 %v639, 2147483648
    %v641 = vmul.f32 %v640, 1.442695
    %v642 = vpow.pop %v641
    %v643 = vadd.f32 %v642, 1.0
    %v644 = vrcp.pop %v643
    %v645 = vmul.f32 1.0, %v644
    %v646 = vadd.f32 %v636, %v215
    %648 = vrot.lane.b32.xlu0 %v646, 64
    %v649 = vpop.permute.xlu0 %648
    %v651 = vmul.f32 %v645, %v649
    %653 = vrot.lane.b32.xlu0 %v651, 64
    %v654 = vpop.permute.xlu0 %653
    %v656 = vadd.f32 %v120, %v654
    %v657 = vtanh.pop %v656
    %v658 = vsub.f32 1.0, %v645
    %660 = vrot.lane.b32.xlu0 %v657, 96
    %v661 = vpop.permute.xlu0 %660
    %v663 = vmul.f32 %v658, %v661
    %v665 = vmul.f32 %v645, %v564
    %v666 = vadd.f32 %v663, %v665
    %668 = vrot.lane.b32.xlu0 %v666, 96
    %v669 = vpop.permute.xlu0 %668
    %v670 = vsel %vm133, %v669, 0
    %672 = vmatprep.subr.mxu0 0.0
    %673 = vmatpush1.msra.mxu0 0.0
    %674 = vmatprep.subr.mxu0 0.0
    %675 = vmatpush1.msra.mxu0 0.0
    %676 = vmatprep.subr.mxu0 0.0
    %677 = vmatpush1.msra.mxu0 0.0
    %678 = vmatprep.subr.mxu0 0.0
    %679 = vmatpush1.msra.mxu0 0.0
    %680 = vmatprep.subr.mxu0 0.0
    %681 = vmatpush1.msra.mxu0 0.0
    %682 = vmatprep.subr.mxu0 0.0
    %683 = vmatpush1.msra.mxu0 0.0
    %684 = vmatprep.subr.mxu0 0.0
    %685 = vmatpush1.msra.mxu0 0.0
    %686 = vmatprep.subr.mxu0 0.0
    %687 = vmatpush1.msra.mxu0 0.0
    %688 = vmatprep.subr.mxu0 0.0
    %689 = vmatpush1.msra.mxu0 0.0
    %690 = vmatprep.subr.mxu0 0.0
    %691 = vmatpush1.msra.mxu0 0.0
    %692 = vmatprep.subr.mxu0 0.0
    %693 = vmatpush1.msra.mxu0 0.0
    %694 = vmatprep.subr.mxu0 0.0
    %695 = vmatpush1.msra.mxu0 0.0
    %696 = vmatprep.subr.mxu0 0.0
    %697 = vmatpush1.msra.mxu0 %v126
    %698 = vmatprep.subr.mxu0 0.0
    %699 = vmatpush1.msra.mxu0 %v125
    %700 = vmatprep.subr.mxu0 0.0
    %701 = vmatpush1.msra.mxu0 %v124
    %702 = vmatprep.subr.mxu0 0.0
    %703 = vmatpush1.msra.mxu0 %v123
    %704 = vmatprep.subr.mxu0 0.0
    %705 = vmatpush2.msra.mxu0 0.0
    %706 = vmatprep.subr.mxu0 0.0
    %707 = vmatpush2.msra.mxu0 0.0
    %708 = vmatprep.subr.mxu0 0.0
    %709 = vmatpush2.msra.mxu0 0.0
    %710 = vmatprep.subr.mxu0 0.0
    %711 = vmatpush2.msra.mxu0 0.0
    %712 = vmatprep.subr.mxu0 0.0
    %713 = vmatpush2.msra.mxu0 0.0
    %714 = vmatprep.subr.mxu0 0.0
    %715 = vmatpush2.msra.mxu0 0.0
    %716 = vmatprep.subr.mxu0 0.0
    %717 = vmatpush2.msra.mxu0 0.0
    %718 = vmatprep.subr.mxu0 0.0
    %719 = vmatpush2.msra.mxu0 0.0
    %720 = vmatprep.subr.mxu0 0.0
    %721 = vmatpush2.msra.mxu0 0.0
    %722 = vmatprep.subr.mxu0 0.0
    %723 = vmatpush2.msra.mxu0 0.0
    %724 = vmatprep.subr.mxu0 0.0
    %725 = vmatpush2.msra.mxu0 0.0
    %726 = vmatprep.subr.mxu0 0.0
    %727 = vmatpush2.msra.mxu0 0.0
    %728 = vmatprep.subr.mxu0 0.0
    %729 = vmatpush2.msra.mxu0 0.0
    %730 = vmatprep.subr.mxu0 0.0
    %731 = vmatpush2.msra.mxu0 0.0
    %732 = vmatprep.subr.mxu0 0.0
    %733 = vmatpush2.msra.mxu0 0.0
    %734 = vmatprep.subr.mxu0 0.0
    %735 = vmatpush2.msra.mxu0 0.0
    %736 = vmatprep.mubr.f32.mxu0 0.0
    %737 = vmatmul.mubr.f32.gmra.mxu0 %v670
    %v738 = vpop.f32.mrf.mxu0
    %v739 = vadd.f32 0.0, %v738
    %v740 = vpop.f32.mrf.mxu0
    %741 = vdwg.mxu0
    %v743 = vrot.slane %v739, 6
    %v745 = vadd.f32 %v120, %v743
    %v746 = vxor.u32 %v745, 2147483648
    %v747 = vmul.f32 %v746, 1.442695
    %v748 = vpow.pop %v747
    %v749 = vadd.f32 %v748, 1.0
    %v750 = vrcp.pop %v749
    %v751 = vmul.f32 1.0, %v750
    %v752 = vadd.f32 %v739, %v215
    %v754 = vrot.slane %v752, 6
    %755 = vrot.lane.b32.xlu0 %v754, 64
    %v756 = vpop.permute.xlu0 %755
    %v758 = vmul.f32 %v751, %v756
    %760 = vrot.lane.b32.xlu0 %v758, 64
    %v761 = vpop.permute.xlu0 %760
    %v763 = vadd.f32 %v120, %v761
    %v764 = vtanh.pop %v763
    %v765 = vsub.f32 1.0, %v751
    %767 = vrot.lane.b32.xlu0 %v764, 96
    %v768 = vpop.permute.xlu0 %767
    %v770 = vmul.f32 %v765, %v768
    %v771 = vrot.slane %v666, 6
    %v773 = vmul.f32 %v751, %v771
    %v774 = vadd.f32 %v770, %v773
    %v776 = vrot.slane %v774, 2
    %777 = vrot.lane.b32.xlu0 %v776, 96
    %v778 = vpop.permute.xlu0 %777
    %v779 = vsel %vm133, %v778, 0
    %781 = vmatprep.subr.mxu0 0.0
    %782 = vmatpush1.msra.mxu0 0.0
    %783 = vmatprep.subr.mxu0 0.0
    %784 = vmatpush1.msra.mxu0 0.0
    %785 = vmatprep.subr.mxu0 0.0
    %786 = vmatpush1.msra.mxu0 0.0
    %787 = vmatprep.subr.mxu0 0.0
    %788 = vmatpush1.msra.mxu0 0.0
    %789 = vmatprep.subr.mxu0 0.0
    %790 = vmatpush1.msra.mxu0 0.0
    %791 = vmatprep.subr.mxu0 0.0
    %792 = vmatpush1.msra.mxu0 0.0
    %793 = vmatprep.subr.mxu0 0.0
    %794 = vmatpush1.msra.mxu0 0.0
    %795 = vmatprep.subr.mxu0 0.0
    %796 = vmatpush1.msra.mxu0 0.0
    %797 = vmatprep.subr.mxu0 0.0
    %798 = vmatpush1.msra.mxu0 0.0
    %799 = vmatprep.subr.mxu0 0.0
    %800 = vmatpush1.msra.mxu0 0.0
    %801 = vmatprep.subr.mxu0 0.0
    %802 = vmatpush1.msra.mxu0 0.0
    %803 = vmatprep.subr.mxu0 0.0
    %804 = vmatpush1.msra.mxu0 0.0
    %805 = vmatprep.subr.mxu0 0.0
    %806 = vmatpush1.msra.mxu0 %v126
    %807 = vmatprep.subr.mxu0 0.0
    %808 = vmatpush1.msra.mxu0 %v125
    %809 = vmatprep.subr.mxu0 0.0
    %810 = vmatpush1.msra.mxu0 %v124
    %811 = vmatprep.subr.mxu0 0.0
    %812 = vmatpush1.msra.mxu0 %v123
    %813 = vmatprep.subr.mxu0 0.0
    %814 = vmatpush2.msra.mxu0 0.0
    %815 = vmatprep.subr.mxu0 0.0
    %816 = vmatpush2.msra.mxu0 0.0
    %817 = vmatprep.subr.mxu0 0.0
    %818 = vmatpush2.msra.mxu0 0.0
    %819 = vmatprep.subr.mxu0 0.0
    %820 = vmatpush2.msra.mxu0 0.0
    %821 = vmatprep.subr.mxu0 0.0
    %822 = vmatpush2.msra.mxu0 0.0
    %823 = vmatprep.subr.mxu0 0.0
    %824 = vmatpush2.msra.mxu0 0.0
    %825 = vmatprep.subr.mxu0 0.0
    %826 = vmatpush2.msra.mxu0 0.0
    %827 = vmatprep.subr.mxu0 0.0
    %828 = vmatpush2.msra.mxu0 0.0
    %829 = vmatprep.subr.mxu0 0.0
    %830 = vmatpush2.msra.mxu0 0.0
    %831 = vmatprep.subr.mxu0 0.0
    %832 = vmatpush2.msra.mxu0 0.0
    %833 = vmatprep.subr.mxu0 0.0
    %834 = vmatpush2.msra.mxu0 0.0
    %835 = vmatprep.subr.mxu0 0.0
    %836 = vmatpush2.msra.mxu0 0.0
    %837 = vmatprep.subr.mxu0 0.0
    %838 = vmatpush2.msra.mxu0 0.0
    %839 = vmatprep.subr.mxu0 0.0
    %840 = vmatpush2.msra.mxu0 0.0
    %841 = vmatprep.subr.mxu0 0.0
    %842 = vmatpush2.msra.mxu0 0.0
    %843 = vmatprep.subr.mxu0 0.0
    %844 = vmatpush2.msra.mxu0 0.0
    %845 = vmatprep.mubr.f32.mxu0 0.0
    %846 = vmatmul.mubr.f32.gmra.mxu0 %v779
    %v847 = vpop.f32.mrf.mxu0
    %v848 = vadd.f32 0.0, %v847
    %v849 = vpop.f32.mrf.mxu0
    %850 = vdwg.mxu0
    %v852 = vrot.slane %v848, 4
    %v854 = vadd.f32 %v120, %v852
    %v855 = vxor.u32 %v854, 2147483648
    %v856 = vmul.f32 %v855, 1.442695
    %v857 = vpow.pop %v856
    %v858 = vadd.f32 %v857, 1.0
    %v859 = vrcp.pop %v858
    %v860 = vmul.f32 1.0, %v859
    %v861 = vadd.f32 %v848, %v215
    %v863 = vrot.slane %v861, 4
    %864 = vrot.lane.b32.xlu0 %v863, 64
    %v865 = vpop.permute.xlu0 %864
    %v867 = vmul.f32 %v860, %v865
    %869 = vrot.lane.b32.xlu0 %v867, 64
    %v870 = vpop.permute.xlu0 %869
    %v872 = vadd.f32 %v120, %v870
    %v873 = vtanh.pop %v872
    %v874 = vsub.f32 1.0, %v860
    %876 = vrot.lane.b32.xlu0 %v873, 96
    %v877 = vpop.permute.xlu0 %876
    %v879 = vmul.f32 %v874, %v877
    %v880 = vrot.slane %v774, 6
    %v882 = vmul.f32 %v860, %v880
    %v883 = vadd.f32 %v879, %v882
    %v885 = vrot.slane %v883, 4
    %886 = vrot.lane.b32.xlu0 %v885, 96
    %v887 = vpop.permute.xlu0 %886
    %v888 = vsel %vm133, %v887, 0
    %890 = vmatprep.subr.mxu0 0.0
    %891 = vmatpush1.msra.mxu0 0.0
    %892 = vmatprep.subr.mxu0 0.0
    %893 = vmatpush1.msra.mxu0 0.0
    %894 = vmatprep.subr.mxu0 0.0
    %895 = vmatpush1.msra.mxu0 0.0
    %896 = vmatprep.subr.mxu0 0.0
    %897 = vmatpush1.msra.mxu0 0.0
    %898 = vmatprep.subr.mxu0 0.0
    %899 = vmatpush1.msra.mxu0 0.0
    %900 = vmatprep.subr.mxu0 0.0
    %901 = vmatpush1.msra.mxu0 0.0
    %902 = vmatprep.subr.mxu0 0.0
    %903 = vmatpush1.msra.mxu0 0.0
    %904 = vmatprep.subr.mxu0 0.0
    %905 = vmatpush1.msra.mxu0 0.0
    %906 = vmatprep.subr.mxu0 0.0
    %907 = vmatpush1.msra.mxu0 0.0
    %908 = vmatprep.subr.mxu0 0.0
    %909 = vmatpush1.msra.mxu0 0.0
    %910 = vmatprep.subr.mxu0 0.0
    %911 = vmatpush1.msra.mxu0 0.0
    %912 = vmatprep.subr.mxu0 0.0
    %913 = vmatpush1.msra.mxu0 0.0
    %914 = vmatprep.subr.mxu0 0.0
    %915 = vmatpush1.msra.mxu0 %v126
    %916 = vmatprep.subr.mxu0 0.0
    %917 = vmatpush1.msra.mxu0 %v125
    %918 = vmatprep.subr.mxu0 0.0
    %919 = vmatpush1.msra.mxu0 %v124
    %920 = vmatprep.subr.mxu0 0.0
    %921 = vmatpush1.msra.mxu0 %v123
    %922 = vmatprep.subr.mxu0 0.0
    %923 = vmatpush2.msra.mxu0 0.0
    %924 = vmatprep.subr.mxu0 0.0
    %925 = vmatpush2.msra.mxu0 0.0
    %926 = vmatprep.subr.mxu0 0.0
    %927 = vmatpush2.msra.mxu0 0.0
    %928 = vmatprep.subr.mxu0 0.0
    %929 = vmatpush2.msra.mxu0 0.0
    %930 = vmatprep.subr.mxu0 0.0
    %931 = vmatpush2.msra.mxu0 0.0
    %932 = vmatprep.subr.mxu0 0.0
    %933 = vmatpush2.msra.mxu0 0.0
    %934 = vmatprep.subr.mxu0 0.0
    %935 = vmatpush2.msra.mxu0 0.0
    %936 = vmatprep.subr.mxu0 0.0
    %937 = vmatpush2.msra.mxu0 0.0
    %938 = vmatprep.subr.mxu0 0.0
    %939 = vmatpush2.msra.mxu0 0.0
    %940 = vmatprep.subr.mxu0 0.0
    %941 = vmatpush2.msra.mxu0 0.0
    %942 = vmatprep.subr.mxu0 0.0
    %943 = vmatpush2.msra.mxu0 0.0
    %944 = vmatprep.subr.mxu0 0.0
    %945 = vmatpush2.msra.mxu0 0.0
    %946 = vmatprep.subr.mxu0 0.0
    %947 = vmatpush2.msra.mxu0 0.0
    %948 = vmatprep.subr.mxu0 0.0
    %949 = vmatpush2.msra.mxu0 0.0
    %950 = vmatprep.subr.mxu0 0.0
    %951 = vmatpush2.msra.mxu0 0.0
    %952 = vmatprep.subr.mxu0 0.0
    %953 = vmatpush2.msra.mxu0 0.0
    %954 = vmatprep.mubr.f32.mxu0 0.0
    %955 = vmatmul.mubr.f32.gmra.mxu0 %v888
    %v956 = vpop.f32.mrf.mxu0
    %v957 = vadd.f32 0.0, %v956
    %v958 = vpop.f32.mrf.mxu0
    %959 = vdwg.mxu0
    %v961 = vrot.slane %v957, 2
    %v963 = vadd.f32 %v120, %v961
    %v964 = vxor.u32 %v963, 2147483648
    %v965 = vmul.f32 %v964, 1.442695
    %v966 = vpow.pop %v965
    %v967 = vadd.f32 %v966, 1.0
    %v968 = vrcp.pop %v967
    %v969 = vmul.f32 1.0, %v968
    %v970 = vadd.f32 %v957, %v215
    %v972 = vrot.slane %v970, 2
    %973 = vrot.lane.b32.xlu0 %v972, 64
    %v974 = vpop.permute.xlu0 %973
    %v976 = vmul.f32 %v969, %v974
    %978 = vrot.lane.b32.xlu0 %v976, 64
    %v979 = vpop.permute.xlu0 %978
    %v981 = vadd.f32 %v120, %v979
    %v982 = vtanh.pop %v981
    %v983 = vsub.f32 1.0, %v969
    %985 = vrot.lane.b32.xlu0 %v982, 96
    %v986 = vpop.permute.xlu0 %985
    %v988 = vmul.f32 %v983, %v986
    %v989 = vrot.slane %v883, 6
    %v991 = vmul.f32 %v969, %v989
    %v992 = vadd.f32 %v988, %v991
    %v993 = vld [vmem:[%s5] sm:$0xff]
    %v994 = vld [vmem:[%s5 + $0x8] sm:$0xff]
    %v995 = vld [vmem:[%s5 + $0x10] sm:$0xff]
    %v996 = vld [vmem:[%s5 + $0x18] sm:$0xff]
    %v997 = vld [vmem:[%s6] sm:$0x1]
    %v999 = vlaneseq
    %v1000 = vshrl.u32 %v999, 7
    %v1001 = vsub.s32 0, %v1000
    %v1002 = vrot.slane %v997, %v1001
    %v1005 = vrot.slane %v992, 6
    %1006 = vrot.lane.b32.xlu0 %v1005, 96
    %v1007 = vpop.permute.xlu0 %1006
    %v1008 = vsel %vm133, %v1007, 0
    %1010 = vmatprep.subr.mxu0 0.0
    %1011 = vmatpush1.msra.mxu0 0.0
    %1012 = vmatprep.subr.mxu0 0.0
    %1013 = vmatpush1.msra.mxu0 0.0
    %1014 = vmatprep.subr.mxu0 0.0
    %1015 = vmatpush1.msra.mxu0 0.0
    %1016 = vmatprep.subr.mxu0 0.0
    %1017 = vmatpush1.msra.mxu0 0.0
    %1018 = vmatprep.subr.mxu0 0.0
    %1019 = vmatpush1.msra.mxu0 0.0
    %1020 = vmatprep.subr.mxu0 0.0
    %1021 = vmatpush1.msra.mxu0 0.0
    %1022 = vmatprep.subr.mxu0 0.0
    %1023 = vmatpush1.msra.mxu0 0.0
    %1024 = vmatprep.subr.mxu0 0.0
    %1025 = vmatpush1.msra.mxu0 0.0
    %1026 = vmatprep.subr.mxu0 0.0
    %1027 = vmatpush1.msra.mxu0 0.0
    %1028 = vmatprep.subr.mxu0 0.0
    %1029 = vmatpush1.msra.mxu0 0.0
    %1030 = vmatprep.subr.mxu0 0.0
    %1031 = vmatpush1.msra.mxu0 0.0
    %1032 = vmatprep.subr.mxu0 0.0
    %1033 = vmatpush1.msra.mxu0 0.0
    %1034 = vmatprep.subr.mxu0 0.0
    %1035 = vmatpush1.msra.mxu0 %v996
    %1036 = vmatprep.subr.mxu0 0.0
    %1037 = vmatpush1.msra.mxu0 %v995
    %1038 = vmatprep.subr.mxu0 0.0
    %1039 = vmatpush1.msra.mxu0 %v994
    %1040 = vmatprep.subr.mxu0 0.0
    %1041 = vmatpush1.msra.mxu0 %v993
    %1042 = vmatprep.subr.mxu0 0.0
    %1043 = vmatpush2.msra.mxu0 0.0
    %1044 = vmatprep.subr.mxu0 0.0
    %1045 = vmatpush2.msra.mxu0 0.0
    %1046 = vmatprep.subr.mxu0 0.0
    %1047 = vmatpush2.msra.mxu0 0.0
    %1048 = vmatprep.subr.mxu0 0.0
    %1049 = vmatpush2.msra.mxu0 0.0
    %1050 = vmatprep.subr.mxu0 0.0
    %1051 = vmatpush2.msra.mxu0 0.0
    %1052 = vmatprep.subr.mxu0 0.0
    %1053 = vmatpush2.msra.mxu0 0.0
    %1054 = vmatprep.subr.mxu0 0.0
    %1055 = vmatpush2.msra.mxu0 0.0
    %1056 = vmatprep.subr.mxu0 0.0
    %1057 = vmatpush2.msra.mxu0 0.0
    %1058 = vmatprep.subr.mxu0 0.0
    %1059 = vmatpush2.msra.mxu0 0.0
    %1060 = vmatprep.subr.mxu0 0.0
    %1061 = vmatpush2.msra.mxu0 0.0
    %1062 = vmatprep.subr.mxu0 0.0
    %1063 = vmatpush2.msra.mxu0 0.0
    %1064 = vmatprep.subr.mxu0 0.0
    %1065 = vmatpush2.msra.mxu0 0.0
    %1066 = vmatprep.subr.mxu0 0.0
    %1067 = vmatpush2.msra.mxu0 0.0
    %1068 = vmatprep.subr.mxu0 0.0
    %1069 = vmatpush2.msra.mxu0 0.0
    %1070 = vmatprep.subr.mxu0 0.0
    %1071 = vmatpush2.msra.mxu0 0.0
    %1072 = vmatprep.subr.mxu0 0.0
    %1073 = vmatpush2.msra.mxu0 0.0
    %1074 = vmatprep.mubr.f32.mxu0 0.0
    %1075 = vmatmul.mubr.f32.gmra.mxu0 %v1008
    %v1076 = vpop.f32.mrf.mxu0
    %v1077 = vadd.f32 %v1002, %v1076
    %v1078 = vpop.f32.mrf.mxu0
    %1079 = vdwg.mxu0
    %vm1080 = vcmask 58368
    %1081 = vst.msk [vmem:[#allocation2] sm:$0x3] %vm1080, %v1077
    // Predicated region
    $region30: #{tpu_custom_call.1} parent=1 // pred_check
      _
    $region31: #{tpu_custom_call.1} parent=1 // pred_check_branch
      %1083 = sbr.rel (0) target = $region33
    $region32: #{tpu_custom_call.1} parent=1 // pred_region
      %s1085 = ssub.s32 32, 32
      %1086 = vsyncadd [#allocation3], %s1085
      %s1088 = sshll.u32 [#allocation2], 4
      %s1089 = int_to_ptr.vmem [resolvable:$true] %s1088
      %1091 = dma.vmem_to_hbm [thread:$0]  %s1089, 32, %s7, [#allocation3]
    $region33: #{tpu_custom_call.1} parent=1 // pred_fallthru
      _
    // Predicated region
    $region34: #{tpu_custom_call.1} parent=1 // pred_check
      _
    $region35: #{tpu_custom_call.1} parent=1 // pred_check_branch
      %1093 = sbr.rel (0) target = $region37
    $region36: #{tpu_custom_call.1} parent=1 // pred_region
      %1094 = dma.done [#allocation3], 32
    $region37: #{tpu_custom_call.1} parent=1 // pred_fallthru
      _
    %1095 = vsyncpa [#allocation3], 1

</llo_original>
